<compile_context>
chip_gen: v7x
topology: tpu7x:2x2x1
jax: 0.10.0
libtpu: 0.0.40
codegen_flags: <defaults>
</compile_context>

<pallas_src>
import jax
import jax.numpy as jnp
from jax.experimental import pallas as pl
from jax.experimental.pallas import tpu as pltpu


def _graph_agg_kernel(x_ref, seg_ref,
                      w1eg_ref, b1eg_ref, w2e_ref, b2e_ref, w2g_ref, b2g_ref,
                      w1a_ref, b1a_ref, w2a_ref, b2a_ref,
                      o_ref):
    x = x_ref[...]                          # (Bt*L, F) token rows, channels-last
    hidden = w2e_ref.shape[0]               # H

    # Fused first layers of mlp / mlp_gate: one lane-dense (F, 2H) matmul.
    h = jnp.dot(x, w1eg_ref[...], preferred_element_type=jnp.float32) + b1eg_ref[...]
    h = jnp.maximum(h, 0.0)

    # Second layers (each contracts its own half of the hidden slab).
    e = jnp.dot(h[:, :hidden], w2e_ref[...],
                preferred_element_type=jnp.float32) + b2e_ref[...]   # (Bt*L, F)
    g = jnp.dot(h[:, hidden:], w2g_ref[...],
                preferred_element_type=jnp.float32) + b2g_ref[...]   # (Bt*L, F)

    # GLU(cat([e, g], -1)) == e * sigmoid(g).  exp + reciprocal run on the EUP.
    gate = pl.reciprocal(1.0 + jnp.exp(-g), approx=True)
    gated = e * gate                                                  # (Bt*L, F)

    # Per-batch sum over L as a single selector matmul (MXU), no reshapes.
    agg = jnp.dot(seg_ref[...], gated,
                  preferred_element_type=jnp.float32)                 # (Bt, F)

    # mlp_agg on the aggregated features.
    ha = jnp.maximum(
        jnp.dot(agg, w1a_ref[...], preferred_element_type=jnp.float32)
        + b1a_ref[...], 0.0)                                          # (Bt, H)
    out = jnp.dot(ha, w2a_ref[...],
                  preferred_element_type=jnp.float32) + b2a_ref[...]  # (Bt, F)
    o_ref[...] = out.astype(o_ref.dtype)


def graph_aggregation(features, params, batch_block=None):
    """features: (B, feature_dim, L) in the torch NCL layout. Returns (B, feature_dim)."""
    B, F, L = features.shape
    H = params['mlp']['W1'].shape[0]
    Bt = B if batch_block is None else batch_block
    # NOTE: if tiling the batch (Bt < B), keep Bt a multiple of 8 so the output
    # block's sublane dim satisfies the (8, 128) rule.  Demo uses Bt == B.
    assert B % Bt == 0
    nb = B // Bt

    # NCL -> channels-last token matrix (layout plumbing, done in plain JAX).
    x_tok = jnp.transpose(features, (0, 2, 1)).reshape(B * L, F)

    # Fused first layers of mlp / mlp_gate: (F, 2H) weight, (1, 2H) bias.
    w1eg = jnp.concatenate([params['mlp']['W1'].T, params['mlp_gate']['W1'].T], axis=1)
    b1eg = jnp.concatenate([params['mlp']['b1'], params['mlp_gate']['b1']])[None, :]
    w2e = params['mlp']['W2'].T
    b2e = params['mlp']['b2'][None, :]
    w2g = params['mlp_gate']['W2'].T
    b2g = params['mlp_gate']['b2'][None, :]
    w1a = params['mlp_agg']['W1'].T
    b1a = params['mlp_agg']['b1'][None, :]
    w2a = params['mlp_agg']['W2'].T
    b2a = params['mlp_agg']['b2'][None, :]

    # Selector performing the per-batch sum over L as one MXU matmul:
    # seg[b, c*L + i] = 1 iff c == b.
    seg = jnp.repeat(jnp.eye(Bt, dtype=jnp.float32), L, axis=1)      # (Bt, Bt*L)

    def full(arr):
        nd = arr.ndim
        return pl.BlockSpec(arr.shape, lambda b, _nd=nd: (0,) * _nd)

    grid_spec = pltpu.PrefetchScalarGridSpec(
        num_scalar_prefetch=0,
        grid=(nb,),
        in_specs=[
            pl.BlockSpec((Bt * L, F), lambda b: (b, 0)),
            full(seg),
            full(w1eg), full(b1eg), full(w2e), full(b2e), full(w2g), full(b2g),
            full(w1a), full(b1a), full(w2a), full(b2a),
        ],
        out_specs=pl.BlockSpec((Bt, F), lambda b: (b, 0)),
    )
    return pl.pallas_call(
        _graph_agg_kernel,
        out_shape=jax.ShapeDtypeStruct((B, F), jnp.float32),
        grid_spec=grid_spec,
        compiler_params=pltpu.CompilerParams(
            dimension_semantics=("parallel",)),
    )(x_tok, seg, w1eg, b1eg, w2e, b2e, w2g, b2g, w1a, b1a, w2a, b2a)


def reference_forward(features, params):
    """Pure-JAX reference mirroring the torch GraphAggregation module."""
    x = jnp.transpose(features, (0, 2, 1))                            # (B, L, F)

    def mlp(t, p):
        h = jax.nn.relu(jnp.einsum('...i,oi->...o', t, p['W1']) + p['b1'])
        return jnp.einsum('...i,oi->...o', h, p['W2']) + p['b2']

    e = mlp(x, params['mlp'])
    g = mlp(x, params['mlp_gate'])
    # F.glu(cat([e, g], -1), -1) == e * sigmoid(g)
    agg = (e * jax.nn.sigmoid(g)).sum(axis=1)                          # (B, F)
    return mlp(agg, params['mlp_agg'])


if __name__ == "__main__":
    B, L = 2, 16
    F, H = 32, 64                      # feature_dim=32, num_hidden=64
    key = jax.random.PRNGKey(0)
    ks = jax.random.split(key, 13)

    def w(k, shape, scale=0.1):
        return scale * jax.random.normal(k, shape, dtype=jnp.float32)

    params = {
        'mlp':      {'W1': w(ks[0], (H, F)), 'b1': w(ks[1], (H,)),
                     'W2': w(ks[2], (F, H)), 'b2': w(ks[3], (F,))},
        'mlp_gate': {'W1': w(ks[4], (H, F)), 'b1': w(ks[5], (H,)),
                     'W2': w(ks[6], (F, H)), 'b2': w(ks[7], (F,))},
        'mlp_agg':  {'W1': w(ks[8], (H, F)), 'b1': w(ks[9], (H,)),
                     'W2': w(ks[10], (F, H)), 'b2': w(ks[11], (F,))},
    }
    features = jax.random.normal(ks[12], (B, F, L), dtype=jnp.float32)  # NCL layout

    out = graph_aggregation(features, params)
    out = jax.block_until_ready(out)

    ref = reference_forward(features, params)
    assert out.shape == (B, F)
    max_err = float(jnp.max(jnp.abs(out - ref)))
    # tolerance covers pl.reciprocal(approx=True) in the GLU gate
    assert jnp.allclose(out, ref, atol=5e-3, rtol=5e-3), max_err
    print("KERNEL_OK")
</pallas_src>

<mosaic_0001>
module attributes {stable_mosaic.version = 11 : i64} {
  func.func @_graph_agg_kernel(%arg0: i32, %arg1: memref<32x32xf32, #tpu.memory_space<vmem>>, %arg2: memref<2x32xf32, #tpu.memory_space<vmem>>, %arg3: memref<32x128xf32, #tpu.memory_space<vmem>>, %arg4: memref<1x128xf32, #tpu.memory_space<vmem>>, %arg5: memref<64x32xf32, #tpu.memory_space<vmem>>, %arg6: memref<1x32xf32, #tpu.memory_space<vmem>>, %arg7: memref<64x32xf32, #tpu.memory_space<vmem>>, %arg8: memref<1x32xf32, #tpu.memory_space<vmem>>, %arg9: memref<32x64xf32, #tpu.memory_space<vmem>>, %arg10: memref<1x64xf32, #tpu.memory_space<vmem>>, %arg11: memref<64x32xf32, #tpu.memory_space<vmem>>, %arg12: memref<1x32xf32, #tpu.memory_space<vmem>>, %arg13: memref<2x32xf32, #tpu.memory_space<vmem>>) attributes {dimension_semantics = [#tpu.dimension_semantics<parallel>], iteration_bounds = array<i64: 1>, scalar_prefetch = 0 : i64, scratch_operands = 0 : i64, tpu.core_type = #tpu.core_type<tc>, window_params = [{transform_indices = @transform_0, window_bounds = array<i64: 32, 32>}, {pipeline_mode = #tpu.pipeline_mode<synchronous>, transform_indices = @transform_1, window_bounds = array<i64: 2, 32>}, {pipeline_mode = #tpu.pipeline_mode<synchronous>, transform_indices = @transform_2, window_bounds = array<i64: 32, 128>}, {pipeline_mode = #tpu.pipeline_mode<synchronous>, transform_indices = @transform_3, window_bounds = array<i64: 1, 128>}, {pipeline_mode = #tpu.pipeline_mode<synchronous>, transform_indices = @transform_4, window_bounds = array<i64: 64, 32>}, {pipeline_mode = #tpu.pipeline_mode<synchronous>, transform_indices = @transform_5, window_bounds = array<i64: 1, 32>}, {pipeline_mode = #tpu.pipeline_mode<synchronous>, transform_indices = @transform_6, window_bounds = array<i64: 64, 32>}, {pipeline_mode = #tpu.pipeline_mode<synchronous>, transform_indices = @transform_7, window_bounds = array<i64: 1, 32>}, {pipeline_mode = #tpu.pipeline_mode<synchronous>, transform_indices = @transform_8, window_bounds = array<i64: 32, 64>}, {pipeline_mode = #tpu.pipeline_mode<synchronous>, transform_indices = @transform_9, window_bounds = array<i64: 1, 64>}, {pipeline_mode = #tpu.pipeline_mode<synchronous>, transform_indices = @transform_10, window_bounds = array<i64: 64, 32>}, {pipeline_mode = #tpu.pipeline_mode<synchronous>, transform_indices = @transform_11, window_bounds = array<i64: 1, 32>}, {transform_indices = @transform_12, window_bounds = array<i64: 2, 32>}]} {
    %c0 = arith.constant 0 : index
    %c0_0 = arith.constant 0 : index
    %0 = vector.load %arg1[%c0, %c0_0] : memref<32x32xf32, #tpu.memory_space<vmem>>, vector<32x32xf32>
    %c0_1 = arith.constant 0 : index
    %c0_2 = arith.constant 0 : index
    %1 = vector.load %arg3[%c0_1, %c0_2] : memref<32x128xf32, #tpu.memory_space<vmem>>, vector<32x128xf32>
    %cst = arith.constant dense<0.000000e+00> : vector<32x128xf32>
    %2 = tpu.matmul %0, %1, %cst {dimension_numbers = #tpu.dot_dimension_numbers<[1], [0], [0], [1], [0, 0, 1, 1], [], []>} : vector<32x32xf32>, vector<32x128xf32>, vector<32x128xf32> -> vector<32x128xf32>
    %c0_3 = arith.constant 0 : index
    %c0_4 = arith.constant 0 : index
    %3 = vector.load %arg4[%c0_3, %c0_4] : memref<1x128xf32, #tpu.memory_space<vmem>>, vector<1x128xf32>
    %4 = vector.broadcast %3 : vector<1x128xf32> to vector<32x128xf32>
    %5 = arith.addf %2, %4 : vector<32x128xf32>
    %cst_5 = arith.constant 0.000000e+00 : f32
    %6 = vector.broadcast %cst_5 : f32 to vector<32x128xf32>
    %7 = arith.maximumf %5, %6 : vector<32x128xf32>
    %8 = vector.extract_strided_slice %7 {offsets = [0, 0], sizes = [32, 64], strides = [1, 1]} : vector<32x128xf32> to vector<32x64xf32>
    %c0_6 = arith.constant 0 : index
    %c0_7 = arith.constant 0 : index
    %9 = vector.load %arg5[%c0_6, %c0_7] : memref<64x32xf32, #tpu.memory_space<vmem>>, vector<64x32xf32>
    %cst_8 = arith.constant dense<0.000000e+00> : vector<32x32xf32>
    %10 = tpu.matmul %8, %9, %cst_8 {dimension_numbers = #tpu.dot_dimension_numbers<[1], [0], [0], [1], [0, 0, 1, 1], [], []>} : vector<32x64xf32>, vector<64x32xf32>, vector<32x32xf32> -> vector<32x32xf32>
    %c0_9 = arith.constant 0 : index
    %c0_10 = arith.constant 0 : index
    %11 = vector.load %arg6[%c0_9, %c0_10] : memref<1x32xf32, #tpu.memory_space<vmem>>, vector<1x32xf32>
    %12 = vector.broadcast %11 : vector<1x32xf32> to vector<32x32xf32>
    %13 = arith.addf %10, %12 : vector<32x32xf32>
    %14 = vector.extract_strided_slice %7 {offsets = [0, 64], sizes = [32, 64], strides = [1, 1]} : vector<32x128xf32> to vector<32x64xf32>
    %c0_11 = arith.constant 0 : index
    %c0_12 = arith.constant 0 : index
    %15 = vector.load %arg7[%c0_11, %c0_12] : memref<64x32xf32, #tpu.memory_space<vmem>>, vector<64x32xf32>
    %cst_13 = arith.constant dense<0.000000e+00> : vector<32x32xf32>
    %16 = tpu.matmul %14, %15, %cst_13 {dimension_numbers = #tpu.dot_dimension_numbers<[1], [0], [0], [1], [0, 0, 1, 1], [], []>} : vector<32x64xf32>, vector<64x32xf32>, vector<32x32xf32> -> vector<32x32xf32>
    %c0_14 = arith.constant 0 : index
    %c0_15 = arith.constant 0 : index
    %17 = vector.load %arg8[%c0_14, %c0_15] : memref<1x32xf32, #tpu.memory_space<vmem>>, vector<1x32xf32>
    %18 = vector.broadcast %17 : vector<1x32xf32> to vector<32x32xf32>
    %19 = arith.addf %16, %18 : vector<32x32xf32>
    %cst_16 = arith.constant 0.000000e+00 : f32
    %20 = vector.broadcast %cst_16 : f32 to vector<32x32xf32>
    %21 = arith.subf %20, %19 : vector<32x32xf32>
    %22 = math.exp %21 : vector<32x32xf32>
    %cst_17 = arith.constant 1.000000e+00 : f32
    %23 = vector.broadcast %cst_17 : f32 to vector<32x32xf32>
    %24 = arith.addf %23, %22 : vector<32x32xf32>
    %25 = tpu.reciprocal %24 {approx = true} : vector<32x32xf32> -> vector<32x32xf32>
    %26 = arith.mulf %13, %25 : vector<32x32xf32>
    %c0_18 = arith.constant 0 : index
    %c0_19 = arith.constant 0 : index
    %27 = vector.load %arg2[%c0_18, %c0_19] : memref<2x32xf32, #tpu.memory_space<vmem>>, vector<2x32xf32>
    %cst_20 = arith.constant dense<0.000000e+00> : vector<2x32xf32>
    %28 = tpu.matmul %27, %26, %cst_20 {dimension_numbers = #tpu.dot_dimension_numbers<[1], [0], [0], [1], [0, 0, 1, 1], [], []>} : vector<2x32xf32>, vector<32x32xf32>, vector<2x32xf32> -> vector<2x32xf32>
    %c0_21 = arith.constant 0 : index
    %c0_22 = arith.constant 0 : index
    %29 = vector.load %arg9[%c0_21, %c0_22] : memref<32x64xf32, #tpu.memory_space<vmem>>, vector<32x64xf32>
    %cst_23 = arith.constant dense<0.000000e+00> : vector<2x64xf32>
    %30 = tpu.matmul %28, %29, %cst_23 {dimension_numbers = #tpu.dot_dimension_numbers<[1], [0], [0], [1], [0, 0, 1, 1], [], []>} : vector<2x32xf32>, vector<32x64xf32>, vector<2x64xf32> -> vector<2x64xf32>
    %c0_24 = arith.constant 0 : index
    %c0_25 = arith.constant 0 : index
    %31 = vector.load %arg10[%c0_24, %c0_25] : memref<1x64xf32, #tpu.memory_space<vmem>>, vector<1x64xf32>
    %32 = vector.broadcast %31 : vector<1x64xf32> to vector<2x64xf32>
    %33 = arith.addf %30, %32 : vector<2x64xf32>
    %cst_26 = arith.constant 0.000000e+00 : f32
    %34 = vector.broadcast %cst_26 : f32 to vector<2x64xf32>
    %35 = arith.maximumf %33, %34 : vector<2x64xf32>
    %c0_27 = arith.constant 0 : index
    %c0_28 = arith.constant 0 : index
    %36 = vector.load %arg11[%c0_27, %c0_28] : memref<64x32xf32, #tpu.memory_space<vmem>>, vector<64x32xf32>
    %cst_29 = arith.constant dense<0.000000e+00> : vector<2x32xf32>
    %37 = tpu.matmul %35, %36, %cst_29 {dimension_numbers = #tpu.dot_dimension_numbers<[1], [0], [0], [1], [0, 0, 1, 1], [], []>} : vector<2x64xf32>, vector<64x32xf32>, vector<2x32xf32> -> vector<2x32xf32>
    %c0_30 = arith.constant 0 : index
    %c0_31 = arith.constant 0 : index
    %38 = vector.load %arg12[%c0_30, %c0_31] : memref<1x32xf32, #tpu.memory_space<vmem>>, vector<1x32xf32>
    %39 = vector.broadcast %38 : vector<1x32xf32> to vector<2x32xf32>
    %40 = arith.addf %37, %39 : vector<2x32xf32>
    %c0_32 = arith.constant 0 : index
    %c0_33 = arith.constant 0 : index
    %41 = vector.load %arg13[%c0_32, %c0_33] : memref<2x32xf32, #tpu.memory_space<vmem>>, vector<2x32xf32>
    tpu.vector_store %arg13[%c0_32, %c0_33], %40 {strides = array<i32>} : memref<2x32xf32, #tpu.memory_space<vmem>>, vector<2x32xf32>,
    return
  }
  func.func @transform_0(%arg0: i32) -> (i32, i32) {
    %c0_i32 = arith.constant 0 : i32
    %c0_i32_0 = arith.constant 0 : i32
    return %arg0, %c0_i32 : i32, i32
  }
  func.func @transform_1(%arg0: i32) -> (i32, i32) {
    %c0_i32 = arith.constant 0 : i32
    %c0_i32_0 = arith.constant 0 : i32
    %c0_i32_1 = arith.constant 0 : i32
    return %c0_i32, %c0_i32_0 : i32, i32
  }
  func.func @transform_2(%arg0: i32) -> (i32, i32) {
    %c0_i32 = arith.constant 0 : i32
    %c0_i32_0 = arith.constant 0 : i32
    %c0_i32_1 = arith.constant 0 : i32
    return %c0_i32, %c0_i32_0 : i32, i32
  }
  func.func @transform_3(%arg0: i32) -> (i32, i32) {
    %c0_i32 = arith.constant 0 : i32
    %c0_i32_0 = arith.constant 0 : i32
    %c0_i32_1 = arith.constant 0 : i32
    return %c0_i32, %c0_i32_0 : i32, i32
  }
  func.func @transform_4(%arg0: i32) -> (i32, i32) {
    %c0_i32 = arith.constant 0 : i32
    %c0_i32_0 = arith.constant 0 : i32
    %c0_i32_1 = arith.constant 0 : i32
    return %c0_i32, %c0_i32_0 : i32, i32
  }
  func.func @transform_5(%arg0: i32) -> (i32, i32) {
    %c0_i32 = arith.constant 0 : i32
    %c0_i32_0 = arith.constant 0 : i32
    %c0_i32_1 = arith.constant 0 : i32
    return %c0_i32, %c0_i32_0 : i32, i32
  }
  func.func @transform_6(%arg0: i32) -> (i32, i32) {
    %c0_i32 = arith.constant 0 : i32
    %c0_i32_0 = arith.constant 0 : i32
    %c0_i32_1 = arith.constant 0 : i32
    return %c0_i32, %c0_i32_0 : i32, i32
  }
  func.func @transform_7(%arg0: i32) -> (i32, i32) {
    %c0_i32 = arith.constant 0 : i32
    %c0_i32_0 = arith.constant 0 : i32
    %c0_i32_1 = arith.constant 0 : i32
    return %c0_i32, %c0_i32_0 : i32, i32
  }
  func.func @transform_8(%arg0: i32) -> (i32, i32) {
    %c0_i32 = arith.constant 0 : i32
    %c0_i32_0 = arith.constant 0 : i32
    %c0_i32_1 = arith.constant 0 : i32
    return %c0_i32, %c0_i32_0 : i32, i32
  }
  func.func @transform_9(%arg0: i32) -> (i32, i32) {
    %c0_i32 = arith.constant 0 : i32
    %c0_i32_0 = arith.constant 0 : i32
    %c0_i32_1 = arith.constant 0 : i32
    return %c0_i32, %c0_i32_0 : i32, i32
  }
  func.func @transform_10(%arg0: i32) -> (i32, i32) {
    %c0_i32 = arith.constant 0 : i32
    %c0_i32_0 = arith.constant 0 : i32
    %c0_i32_1 = arith.constant 0 : i32
    return %c0_i32, %c0_i32_0 : i32, i32
  }
  func.func @transform_11(%arg0: i32) -> (i32, i32) {
    %c0_i32 = arith.constant 0 : i32
    %c0_i32_0 = arith.constant 0 : i32
    %c0_i32_1 = arith.constant 0 : i32
    return %c0_i32, %c0_i32_0 : i32, i32
  }
  func.func @transform_12(%arg0: i32) -> (i32, i32) {
    %c0_i32 = arith.constant 0 : i32
    %c0_i32_0 = arith.constant 0 : i32
    return %arg0, %c0_i32 : i32, i32
  }
}

</mosaic_0001>

<llo_original>
// kernel: tpu_custom_call.1
$region0: #{tpu_custom_call.1}
  #allocation0 [shape = 'u32[]', space=smem, size = 0x4, offset = 0x4, fixed_abs, tag = 'smem constant byte address 0x4 - core index']
  #allocation1 [shape = 'u32[144,128]{1,0:T(1,128)}', space=vmem, size = 0x12000, scoped, tag = 'internal scratch']
  %s0 = inlined_call_operand.vmem [shape: f32[32,32], index: 0, kind: input, shape index: {}]
  %s1 = inlined_call_operand.vmem [shape: f32[2,32], index: 1, kind: input, shape index: {}]
  %s2 = inlined_call_operand.vmem [shape: f32[32,128], index: 2, kind: input, shape index: {}]
  %s3 = inlined_call_operand.vmem [shape: f32[1,128], index: 3, kind: input, shape index: {}]
  %s4 = inlined_call_operand.vmem [shape: f32[64,32], index: 4, kind: input, shape index: {}]
  %s5 = inlined_call_operand.vmem [shape: f32[1,32], index: 5, kind: input, shape index: {}]
  %s6 = inlined_call_operand.vmem [shape: f32[64,32], index: 6, kind: input, shape index: {}]
  %s7 = inlined_call_operand.vmem [shape: f32[1,32], index: 7, kind: input, shape index: {}]
  %s8 = inlined_call_operand.vmem [shape: f32[32,64], index: 8, kind: input, shape index: {}]
  %s9 = inlined_call_operand.vmem [shape: f32[1,64], index: 9, kind: input, shape index: {}]
  %s10 = inlined_call_operand.vmem [shape: f32[64,32], index: 10, kind: input, shape index: {}]
  %s11 = inlined_call_operand.vmem [shape: f32[1,32], index: 11, kind: input, shape index: {}]
  %s12 = inlined_call_operand.hbm [shape: f32[2,32], index: 12, kind: output, shape index: {}]
  %s13 = sld [smem:[#allocation0]]
  $region58: #{tpu_custom_call.1} parent=0
    _
  %s15 = ssub.s32 1, %s13
  %s16 = scalar_select 0, %s15, %s13
  $region1: #{tpu_custom_call.1} parent=0
    #allocation2 [shape = 'u8[1024]{0}', space=vmem, size = 0x400, scoped, tag = 'output window, operand 0, single buffered']
    #allocation3 [shape = 's32[1]{0}', space=sflag, size = 0x4, scoped, tag = 'scoped memory for tpu_custom_call.1']
    %17 = vsyncpa [#allocation3], 0
    // Predicated region
    $region2: #{tpu_custom_call.1} parent=1 // pred_check
      _
    $region3: #{tpu_custom_call.1} parent=1 // pred_check_branch
      %19 = sbr.rel (0) target = $region5
    $region4: #{tpu_custom_call.1} parent=1 // pred_region
      _
    $region5: #{tpu_custom_call.1} parent=1 // pred_fallthru
      _
    // Predicated region
    $region6: #{tpu_custom_call.1} parent=1 // pred_check
      _
    $region7: #{tpu_custom_call.1} parent=1 // pred_check_branch
      %21 = sbr.rel (0) target = $region9
    $region8: #{tpu_custom_call.1} parent=1 // pred_region
      _
    $region9: #{tpu_custom_call.1} parent=1 // pred_fallthru
      _
    // Predicated region
    $region10: #{tpu_custom_call.1} parent=1 // pred_check
      _
    $region11: #{tpu_custom_call.1} parent=1 // pred_check_branch
      %23 = sbr.rel (0) target = $region13
    $region12: #{tpu_custom_call.1} parent=1 // pred_region
      _
    $region13: #{tpu_custom_call.1} parent=1 // pred_fallthru
      _
    // Predicated region
    $region14: #{tpu_custom_call.1} parent=1 // pred_check
      _
    $region15: #{tpu_custom_call.1} parent=1 // pred_check_branch
      %25 = sbr.rel (0) target = $region17
    $region16: #{tpu_custom_call.1} parent=1 // pred_region
      _
    $region17: #{tpu_custom_call.1} parent=1 // pred_fallthru
      _
    // Predicated region
    $region18: #{tpu_custom_call.1} parent=1 // pred_check
      _
    $region19: #{tpu_custom_call.1} parent=1 // pred_check_branch
      %27 = sbr.rel (0) target = $region21
    $region20: #{tpu_custom_call.1} parent=1 // pred_region
      _
    $region21: #{tpu_custom_call.1} parent=1 // pred_fallthru
      _
    // Predicated region
    $region22: #{tpu_custom_call.1} parent=1 // pred_check
      _
    $region23: #{tpu_custom_call.1} parent=1 // pred_check_branch
      %29 = sbr.rel (0) target = $region25
    $region24: #{tpu_custom_call.1} parent=1 // pred_region
      _
    $region25: #{tpu_custom_call.1} parent=1 // pred_fallthru
      _
    // Predicated region
    $region26: #{tpu_custom_call.1} parent=1 // pred_check
      _
    $region27: #{tpu_custom_call.1} parent=1 // pred_check_branch
      %31 = sbr.rel (0) target = $region29
    $region28: #{tpu_custom_call.1} parent=1 // pred_region
      _
    $region29: #{tpu_custom_call.1} parent=1 // pred_fallthru
      _
    // Predicated region
    $region30: #{tpu_custom_call.1} parent=1 // pred_check
      _
    $region31: #{tpu_custom_call.1} parent=1 // pred_check_branch
      %33 = sbr.rel (0) target = $region33
    $region32: #{tpu_custom_call.1} parent=1 // pred_region
      _
    $region33: #{tpu_custom_call.1} parent=1 // pred_fallthru
      _
    // Predicated region
    $region34: #{tpu_custom_call.1} parent=1 // pred_check
      _
    $region35: #{tpu_custom_call.1} parent=1 // pred_check_branch
      %35 = sbr.rel (0) target = $region37
    $region36: #{tpu_custom_call.1} parent=1 // pred_region
      _
    $region37: #{tpu_custom_call.1} parent=1 // pred_fallthru
      _
    // Predicated region
    $region38: #{tpu_custom_call.1} parent=1 // pred_check
      _
    $region39: #{tpu_custom_call.1} parent=1 // pred_check_branch
      %37 = sbr.rel (0) target = $region41
    $region40: #{tpu_custom_call.1} parent=1 // pred_region
      _
    $region41: #{tpu_custom_call.1} parent=1 // pred_fallthru
      _
    // Predicated region
    $region42: #{tpu_custom_call.1} parent=1 // pred_check
      _
    $region43: #{tpu_custom_call.1} parent=1 // pred_check_branch
      %39 = sbr.rel (0) target = $region45
    $region44: #{tpu_custom_call.1} parent=1 // pred_region
      _
    $region45: #{tpu_custom_call.1} parent=1 // pred_fallthru
      _
    // Predicated region
    $region46: #{tpu_custom_call.1} parent=1 // pred_check
      _
    $region47: #{tpu_custom_call.1} parent=1 // pred_check_branch
      %41 = sbr.rel (0) target = $region49
    $region48: #{tpu_custom_call.1} parent=1 // pred_region
      _
    $region49: #{tpu_custom_call.1} parent=1 // pred_fallthru
      _
    %v42 = vld [vmem:[%s0] sm:$0xff]
    %v43 = vld [vmem:[%s0 + $0x8] sm:$0xff]
    %v44 = vld [vmem:[%s0 + $0x10] sm:$0xff]
    %v45 = vld [vmem:[%s0 + $0x18] sm:$0xff]
    %v46 = vld [vmem:[%s2] sm:$0xff]
    %v47 = vld [vmem:[%s2 + $0x8] sm:$0xff]
    %v48 = vld [vmem:[%s2 + $0x10] sm:$0xff]
    %v49 = vld [vmem:[%s2 + $0x18] sm:$0xff]
    %v50 = vld [vmem:[%s3] sm:$0x1]
    %v52 = vlaneseq
    %v53 = vshrl.u32 %v52, 7
    %v54 = vsub.s32 0, %v53
    %v55 = vrot.slane %v50, %v54
    %vm57 = vcmask 261120
    %v59 = vsel %vm57, %v42, 0
    %v62 = vsel %vm57, %v43, 0
    %v65 = vsel %vm57, %v44, 0
    %v68 = vsel %vm57, %v45, 0
    %70 = vmatprep.subr.mxu0 0.0
    %71 = vmatpush1.msra.mxu0 %v46
    %72 = vmatprep.subr.mxu0 0.0
    %73 = vmatpush1.msra.mxu0 %v47
    %74 = vmatprep.subr.mxu0 0.0
    %75 = vmatpush1.msra.mxu0 %v48
    %76 = vmatprep.subr.mxu0 0.0
    %77 = vmatpush1.msra.mxu0 %v49
    %78 = vmatprep.subr.mxu0 0.0
    %79 = vmatpush1.msra.mxu0 0.0
    %80 = vmatprep.subr.mxu0 0.0
    %81 = vmatpush1.msra.mxu0 0.0
    %82 = vmatprep.subr.mxu0 0.0
    %83 = vmatpush1.msra.mxu0 0.0
    %84 = vmatprep.subr.mxu0 0.0
    %85 = vmatpush1.msra.mxu0 0.0
    %86 = vmatprep.subr.mxu0 0.0
    %87 = vmatpush1.msra.mxu0 0.0
    %88 = vmatprep.subr.mxu0 0.0
    %89 = vmatpush1.msra.mxu0 0.0
    %90 = vmatprep.subr.mxu0 0.0
    %91 = vmatpush1.msra.mxu0 0.0
    %92 = vmatprep.subr.mxu0 0.0
    %93 = vmatpush1.msra.mxu0 0.0
    %94 = vmatprep.subr.mxu0 0.0
    %95 = vmatpush1.msra.mxu0 0.0
    %96 = vmatprep.subr.mxu0 0.0
    %97 = vmatpush1.msra.mxu0 0.0
    %98 = vmatprep.subr.mxu0 0.0
    %99 = vmatpush1.msra.mxu0 0.0
    %100 = vmatprep.subr.mxu0 0.0
    %101 = vmatpush1.msra.mxu0 0.0
    %102 = vmatprep.subr.mxu0 0.0
    %103 = vmatpush1.msra.mxu0 0.0
    %104 = vmatprep.subr.mxu0 0.0
    %105 = vmatpush1.msra.mxu0 0.0
    %106 = vmatprep.subr.mxu0 0.0
    %107 = vmatpush1.msra.mxu0 0.0
    %108 = vmatprep.subr.mxu0 0.0
    %109 = vmatpush1.msra.mxu0 0.0
    %110 = vmatprep.subr.mxu0 0.0
    %111 = vmatpush1.msra.mxu0 0.0
    %112 = vmatprep.subr.mxu0 0.0
    %113 = vmatpush1.msra.mxu0 0.0
    %114 = vmatprep.subr.mxu0 0.0
    %115 = vmatpush1.msra.mxu0 0.0
    %116 = vmatprep.subr.mxu0 0.0
    %117 = vmatpush1.msra.mxu0 0.0
    %118 = vmatprep.subr.mxu0 0.0
    %119 = vmatpush1.msra.mxu0 0.0
    %120 = vmatprep.subr.mxu0 0.0
    %121 = vmatpush1.msra.mxu0 0.0
    %122 = vmatprep.subr.mxu0 0.0
    %123 = vmatpush1.msra.mxu0 0.0
    %124 = vmatprep.subr.mxu0 0.0
    %125 = vmatpush1.msra.mxu0 0.0
    %126 = vmatprep.subr.mxu0 0.0
    %127 = vmatpush1.msra.mxu0 0.0
    %128 = vmatprep.subr.mxu0 0.0
    %129 = vmatpush1.msra.mxu0 0.0
    %130 = vmatprep.subr.mxu0 0.0
    %131 = vmatpush1.msra.mxu0 0.0
    %132 = vmatprep.subr.mxu0 0.0
    %133 = vmatpush1.msra.mxu0 0.0
    %134 = vmatprep.mubr.f32.mxu0 0.0
    %135 = vmatmul.mubr.f32.gmra.mrb[0].mxu0 %v59
    %v136 = vpop.f32.mrb[0].mxu0
    %v137 = vadd.f32 %v55, %v136
    %v138 = vpop.f32.mrb[0].mxu0
    %139 = vmatprep.mubr.f32.mxu0 0.0
    %140 = vmatmul.mubr.f32.gmra.mrb[0].mxu0 %v62
    %v141 = vpop.f32.mrb[0].mxu0
    %v142 = vadd.f32 %v55, %v141
    %v143 = vpop.f32.mrb[0].mxu0
    %144 = vmatprep.mubr.f32.mxu0 0.0
    %145 = vmatmul.mubr.f32.gmra.mrb[0].mxu0 %v65
    %v146 = vpop.f32.mrb[0].mxu0
    %v147 = vadd.f32 %v55, %v146
    %v148 = vpop.f32.mrb[0].mxu0
    %149 = vmatprep.mubr.f32.mxu0 0.0
    %150 = vmatmul.mubr.f32.gmra.mrb[0].mxu0 %v68
    %v151 = vpop.f32.mrb[0].mxu0
    %v152 = vadd.f32 %v55, %v151
    %v153 = vpop.f32.mrb[0].mxu0
    %154 = vdwg.mxu0
    %v155 = vmax.f32 %v137, 0.0
    %v156 = vmax.f32 %v142, 0.0
    %v157 = vmax.f32 %v147, 0.0
    %v158 = vmax.f32 %v152, 0.0
    %v159 = vld [vmem:[%s4] sm:$0xff]
    %v160 = vld [vmem:[%s4 + $0x8] sm:$0xff]
    %v161 = vld [vmem:[%s4 + $0x10] sm:$0xff]
    %v162 = vld [vmem:[%s4 + $0x18] sm:$0xff]
    %v163 = vld [vmem:[%s4 + $0x20] sm:$0xff]
    %v164 = vld [vmem:[%s4 + $0x28] sm:$0xff]
    %v165 = vld [vmem:[%s4 + $0x30] sm:$0xff]
    %v166 = vld [vmem:[%s4 + $0x38] sm:$0xff]
    %v167 = vld [vmem:[%s5] sm:$0x1]
    %v169 = vlaneseq
    %v170 = vshrl.u32 %v169, 7
    %v171 = vsub.s32 0, %v170
    %v172 = vrot.slane %v167, %v171
    %vm174 = vcmask 523264
    %v176 = vsel %vm174, %v155, 0
    %v179 = vsel %vm174, %v156, 0
    %v182 = vsel %vm174, %v157, 0
    %v185 = vsel %vm174, %v158, 0
    %187 = vmatprep.subr.mxu0 0.0
    %188 = vmatpush1.msra.mxu0 %v159
    %189 = vmatprep.subr.mxu0 0.0
    %190 = vmatpush1.msra.mxu0 %v160
    %191 = vmatprep.subr.mxu0 0.0
    %192 = vmatpush1.msra.mxu0 %v161
    %193 = vmatprep.subr.mxu0 0.0
    %194 = vmatpush1.msra.mxu0 %v162
    %195 = vmatprep.subr.mxu0 0.0
    %196 = vmatpush1.msra.mxu0 %v163
    %197 = vmatprep.subr.mxu0 0.0
    %198 = vmatpush1.msra.mxu0 %v164
    %199 = vmatprep.subr.mxu0 0.0
    %200 = vmatpush1.msra.mxu0 %v165
    %201 = vmatprep.subr.mxu0 0.0
    %202 = vmatpush1.msra.mxu0 %v166
    %203 = vmatprep.subr.mxu0 0.0
    %204 = vmatpush1.msra.mxu0 0.0
    %205 = vmatprep.subr.mxu0 0.0
    %206 = vmatpush1.msra.mxu0 0.0
    %207 = vmatprep.subr.mxu0 0.0
    %208 = vmatpush1.msra.mxu0 0.0
    %209 = vmatprep.subr.mxu0 0.0
    %210 = vmatpush1.msra.mxu0 0.0
    %211 = vmatprep.subr.mxu0 0.0
    %212 = vmatpush1.msra.mxu0 0.0
    %213 = vmatprep.subr.mxu0 0.0
    %214 = vmatpush1.msra.mxu0 0.0
    %215 = vmatprep.subr.mxu0 0.0
    %216 = vmatpush1.msra.mxu0 0.0
    %217 = vmatprep.subr.mxu0 0.0
    %218 = vmatpush1.msra.mxu0 0.0
    %219 = vmatprep.subr.mxu0 0.0
    %220 = vmatpush1.msra.mxu0 0.0
    %221 = vmatprep.subr.mxu0 0.0
    %222 = vmatpush1.msra.mxu0 0.0
    %223 = vmatprep.subr.mxu0 0.0
    %224 = vmatpush1.msra.mxu0 0.0
    %225 = vmatprep.subr.mxu0 0.0
    %226 = vmatpush1.msra.mxu0 0.0
    %227 = vmatprep.subr.mxu0 0.0
    %228 = vmatpush1.msra.mxu0 0.0
    %229 = vmatprep.subr.mxu0 0.0
    %230 = vmatpush1.msra.mxu0 0.0
    %231 = vmatprep.subr.mxu0 0.0
    %232 = vmatpush1.msra.mxu0 0.0
    %233 = vmatprep.subr.mxu0 0.0
    %234 = vmatpush1.msra.mxu0 0.0
    %235 = vmatprep.subr.mxu0 0.0
    %236 = vmatpush1.msra.mxu0 0.0
    %237 = vmatprep.subr.mxu0 0.0
    %238 = vmatpush1.msra.mxu0 0.0
    %239 = vmatprep.subr.mxu0 0.0
    %240 = vmatpush1.msra.mxu0 0.0
    %241 = vmatprep.subr.mxu0 0.0
    %242 = vmatpush1.msra.mxu0 0.0
    %243 = vmatprep.subr.mxu0 0.0
    %244 = vmatpush1.msra.mxu0 0.0
    %245 = vmatprep.subr.mxu0 0.0
    %246 = vmatpush1.msra.mxu0 0.0
    %247 = vmatprep.subr.mxu0 0.0
    %248 = vmatpush1.msra.mxu0 0.0
    %249 = vmatprep.subr.mxu0 0.0
    %250 = vmatpush1.msra.mxu0 0.0
    %251 = vmatprep.mubr.f32.mxu0 0.0
    %252 = vmatmul.mubr.f32.gmra.mrb[0].mxu0 %v176
    %v253 = vpop.f32.mrb[0].mxu0
    %v254 = vadd.f32 %v172, %v253
    %v255 = vpop.f32.mrb[0].mxu0
    %256 = vmatprep.mubr.f32.mxu0 0.0
    %257 = vmatmul.mubr.f32.gmra.mrb[0].mxu0 %v179
    %v258 = vpop.f32.mrb[0].mxu0
    %v259 = vadd.f32 %v172, %v258
    %v260 = vpop.f32.mrb[0].mxu0
    %261 = vmatprep.mubr.f32.mxu0 0.0
    %262 = vmatmul.mubr.f32.gmra.mrb[0].mxu0 %v182
    %v263 = vpop.f32.mrb[0].mxu0
    %v264 = vadd.f32 %v172, %v263
    %v265 = vpop.f32.mrb[0].mxu0
    %266 = vmatprep.mubr.f32.mxu0 0.0
    %267 = vmatmul.mubr.f32.gmra.mrb[0].mxu0 %v185
    %v268 = vpop.f32.mrb[0].mxu0
    %v269 = vadd.f32 %v172, %v268
    %v270 = vpop.f32.mrb[0].mxu0
    %271 = vdwg.mxu0
    %v272 = vld [vmem:[%s6] sm:$0xff]
    %v273 = vld [vmem:[%s6 + $0x8] sm:$0xff]
    %v274 = vld [vmem:[%s6 + $0x10] sm:$0xff]
    %v275 = vld [vmem:[%s6 + $0x18] sm:$0xff]
    %v276 = vld [vmem:[%s6 + $0x20] sm:$0xff]
    %v277 = vld [vmem:[%s6 + $0x28] sm:$0xff]
    %v278 = vld [vmem:[%s6 + $0x30] sm:$0xff]
    %v279 = vld [vmem:[%s6 + $0x38] sm:$0xff]
    %v280 = vld [vmem:[%s7] sm:$0x1]
    %v282 = vlaneseq
    %v283 = vshrl.u32 %v282, 7
    %v284 = vsub.s32 0, %v283
    %v285 = vrot.slane %v280, %v284
    %287 = vrot.lane.b32.xlu0 %v155, 64
    %v288 = vpop.permute.xlu0 %287
    %289 = vrot.lane.b32.xlu0 %v156, 64
    %v290 = vpop.permute.xlu0 %289
    %291 = vrot.lane.b32.xlu0 %v157, 64
    %v292 = vpop.permute.xlu0 %291
    %293 = vrot.lane.b32.xlu0 %v158, 64
    %v294 = vpop.permute.xlu0 %293
    %v295 = vsel %vm174, %v288, 0
    %v297 = vsel %vm174, %v290, 0
    %v299 = vsel %vm174, %v292, 0
    %v301 = vsel %vm174, %v294, 0
    %303 = vmatprep.subr.mxu0 0.0
    %304 = vmatpush1.msra.mxu0 %v272
    %305 = vmatprep.subr.mxu0 0.0
    %306 = vmatpush1.msra.mxu0 %v273
    %307 = vmatprep.subr.mxu0 0.0
    %308 = vmatpush1.msra.mxu0 %v274
    %309 = vmatprep.subr.mxu0 0.0
    %310 = vmatpush1.msra.mxu0 %v275
    %311 = vmatprep.subr.mxu0 0.0
    %312 = vmatpush1.msra.mxu0 %v276
    %313 = vmatprep.subr.mxu0 0.0
    %314 = vmatpush1.msra.mxu0 %v277
    %315 = vmatprep.subr.mxu0 0.0
    %316 = vmatpush1.msra.mxu0 %v278
    %317 = vmatprep.subr.mxu0 0.0
    %318 = vmatpush1.msra.mxu0 %v279
    %319 = vmatprep.subr.mxu0 0.0
    %320 = vmatpush1.msra.mxu0 0.0
    %321 = vmatprep.subr.mxu0 0.0
    %322 = vmatpush1.msra.mxu0 0.0
    %323 = vmatprep.subr.mxu0 0.0
    %324 = vmatpush1.msra.mxu0 0.0
    %325 = vmatprep.subr.mxu0 0.0
    %326 = vmatpush1.msra.mxu0 0.0
    %327 = vmatprep.subr.mxu0 0.0
    %328 = vmatpush1.msra.mxu0 0.0
    %329 = vmatprep.subr.mxu0 0.0
    %330 = vmatpush1.msra.mxu0 0.0
    %331 = vmatprep.subr.mxu0 0.0
    %332 = vmatpush1.msra.mxu0 0.0
    %333 = vmatprep.subr.mxu0 0.0
    %334 = vmatpush1.msra.mxu0 0.0
    %335 = vmatprep.subr.mxu0 0.0
    %336 = vmatpush1.msra.mxu0 0.0
    %337 = vmatprep.subr.mxu0 0.0
    %338 = vmatpush1.msra.mxu0 0.0
    %339 = vmatprep.subr.mxu0 0.0
    %340 = vmatpush1.msra.mxu0 0.0
    %341 = vmatprep.subr.mxu0 0.0
    %342 = vmatpush1.msra.mxu0 0.0
    %343 = vmatprep.subr.mxu0 0.0
    %344 = vmatpush1.msra.mxu0 0.0
    %345 = vmatprep.subr.mxu0 0.0
    %346 = vmatpush1.msra.mxu0 0.0
    %347 = vmatprep.subr.mxu0 0.0
    %348 = vmatpush1.msra.mxu0 0.0
    %349 = vmatprep.subr.mxu0 0.0
    %350 = vmatpush1.msra.mxu0 0.0
    %351 = vmatprep.subr.mxu0 0.0
    %352 = vmatpush1.msra.mxu0 0.0
    %353 = vmatprep.subr.mxu0 0.0
    %354 = vmatpush1.msra.mxu0 0.0
    %355 = vmatprep.subr.mxu0 0.0
    %356 = vmatpush1.msra.mxu0 0.0
    %357 = vmatprep.subr.mxu0 0.0
    %358 = vmatpush1.msra.mxu0 0.0
    %359 = vmatprep.subr.mxu0 0.0
    %360 = vmatpush1.msra.mxu0 0.0
    %361 = vmatprep.subr.mxu0 0.0
    %362 = vmatpush1.msra.mxu0 0.0
    %363 = vmatprep.subr.mxu0 0.0
    %364 = vmatpush1.msra.mxu0 0.0
    %365 = vmatprep.subr.mxu0 0.0
    %366 = vmatpush1.msra.mxu0 0.0
    %367 = vmatprep.mubr.f32.mxu0 0.0
    %368 = vmatmul.mubr.f32.gmra.mrb[0].mxu0 %v295
    %v369 = vpop.f32.mrb[0].mxu0
    %v370 = vadd.f32 %v285, %v369
    %v371 = vpop.f32.mrb[0].mxu0
    %372 = vmatprep.mubr.f32.mxu0 0.0
    %373 = vmatmul.mubr.f32.gmra.mrb[0].mxu0 %v297
    %v374 = vpop.f32.mrb[0].mxu0
    %v375 = vadd.f32 %v285, %v374
    %v376 = vpop.f32.mrb[0].mxu0
    %377 = vmatprep.mubr.f32.mxu0 0.0
    %378 = vmatmul.mubr.f32.gmra.mrb[0].mxu0 %v299
    %v379 = vpop.f32.mrb[0].mxu0
    %v380 = vadd.f32 %v285, %v379
    %v381 = vpop.f32.mrb[0].mxu0
    %382 = vmatprep.mubr.f32.mxu0 0.0
    %383 = vmatmul.mubr.f32.gmra.mrb[0].mxu0 %v301
    %v384 = vpop.f32.mrb[0].mxu0
    %v385 = vadd.f32 %v285, %v384
    %v386 = vpop.f32.mrb[0].mxu0
    %387 = vdwg.mxu0
    %v388 = vsub.f32 0.0, %v370
    %v389 = vsub.f32 0.0, %v375
    %v390 = vsub.f32 0.0, %v380
    %v391 = vsub.f32 0.0, %v385
    %v392 = vmul.f32 %v388, 1.442695
    %v393 = vpow.pop %v392
    %v394 = vmul.f32 %v389, 1.442695
    %v395 = vpow.pop %v394
    %v396 = vmul.f32 %v390, 1.442695
    %v397 = vpow.pop %v396
    %v398 = vmul.f32 %v391, 1.442695
    %v399 = vpow.pop %v398
    %v400 = vadd.f32 %v393, 1.0
    %v401 = vadd.f32 %v395, 1.0
    %v402 = vadd.f32 %v397, 1.0
    %v403 = vadd.f32 %v399, 1.0
    %v404 = vrcp.pop %v400
    %v405 = vrcp.pop %v401
    %v406 = vrcp.pop %v402
    %v407 = vrcp.pop %v403
    %v408 = vmul.f32 %v254, %v404
    %v409 = vmul.f32 %v259, %v405
    %v410 = vmul.f32 %v264, %v406
    %v411 = vmul.f32 %v269, %v407
    %v412 = vld [vmem:[%s1] sm:$0x3]
    %v414 = vsel %vm57, %v412, 0
    %416 = vmatprep.subr.mxu0 0.0
    %417 = vmatpush1.msra.mxu0 %v408
    %418 = vmatprep.subr.mxu0 0.0
    %419 = vmatpush1.msra.mxu0 %v409
    %420 = vmatprep.subr.mxu0 0.0
    %421 = vmatpush1.msra.mxu0 %v410
    %422 = vmatprep.subr.mxu0 0.0
    %423 = vmatpush1.msra.mxu0 %v411
    %424 = vmatprep.subr.mxu0 0.0
    %425 = vmatpush1.msra.mxu0 0.0
    %426 = vmatprep.subr.mxu0 0.0
    %427 = vmatpush1.msra.mxu0 0.0
    %428 = vmatprep.subr.mxu0 0.0
    %429 = vmatpush1.msra.mxu0 0.0
    %430 = vmatprep.subr.mxu0 0.0
    %431 = vmatpush1.msra.mxu0 0.0
    %432 = vmatprep.subr.mxu0 0.0
    %433 = vmatpush1.msra.mxu0 0.0
    %434 = vmatprep.subr.mxu0 0.0
    %435 = vmatpush1.msra.mxu0 0.0
    %436 = vmatprep.subr.mxu0 0.0
    %437 = vmatpush1.msra.mxu0 0.0
    %438 = vmatprep.subr.mxu0 0.0
    %439 = vmatpush1.msra.mxu0 0.0
    %440 = vmatprep.subr.mxu0 0.0
    %441 = vmatpush1.msra.mxu0 0.0
    %442 = vmatprep.subr.mxu0 0.0
    %443 = vmatpush1.msra.mxu0 0.0
    %444 = vmatprep.subr.mxu0 0.0
    %445 = vmatpush1.msra.mxu0 0.0
    %446 = vmatprep.subr.mxu0 0.0
    %447 = vmatpush1.msra.mxu0 0.0
    %448 = vmatprep.subr.mxu0 0.0
    %449 = vmatpush1.msra.mxu0 0.0
    %450 = vmatprep.subr.mxu0 0.0
    %451 = vmatpush1.msra.mxu0 0.0
    %452 = vmatprep.subr.mxu0 0.0
    %453 = vmatpush1.msra.mxu0 0.0
    %454 = vmatprep.subr.mxu0 0.0
    %455 = vmatpush1.msra.mxu0 0.0
    %456 = vmatprep.subr.mxu0 0.0
    %457 = vmatpush1.msra.mxu0 0.0
    %458 = vmatprep.subr.mxu0 0.0
    %459 = vmatpush1.msra.mxu0 0.0
    %460 = vmatprep.subr.mxu0 0.0
    %461 = vmatpush1.msra.mxu0 0.0
    %462 = vmatprep.subr.mxu0 0.0
    %463 = vmatpush1.msra.mxu0 0.0
    %464 = vmatprep.subr.mxu0 0.0
    %465 = vmatpush1.msra.mxu0 0.0
    %466 = vmatprep.subr.mxu0 0.0
    %467 = vmatpush1.msra.mxu0 0.0
    %468 = vmatprep.subr.mxu0 0.0
    %469 = vmatpush1.msra.mxu0 0.0
    %470 = vmatprep.subr.mxu0 0.0
    %471 = vmatpush1.msra.mxu0 0.0
    %472 = vmatprep.subr.mxu0 0.0
    %473 = vmatpush1.msra.mxu0 0.0
    %474 = vmatprep.subr.mxu0 0.0
    %475 = vmatpush1.msra.mxu0 0.0
    %476 = vmatprep.subr.mxu0 0.0
    %477 = vmatpush1.msra.mxu0 0.0
    %478 = vmatprep.subr.mxu0 0.0
    %479 = vmatpush1.msra.mxu0 0.0
    %480 = vmatprep.mubr.f32.mxu0 0.0
    %481 = vmatmul.mubr.f32.gmra.mrb[0].mxu0 %v414
    %v482 = vpop.f32.mrb[0].mxu0
    %v483 = vadd.f32 0.0, %v482
    %v484 = vpop.f32.mrb[0].mxu0
    %485 = vdwg.mxu0
    %v486 = vld [vmem:[%s8] sm:$0xff]
    %v487 = vld [vmem:[%s8 + $0x8] sm:$0xff]
    %v488 = vld [vmem:[%s8 + $0x10] sm:$0xff]
    %v489 = vld [vmem:[%s8 + $0x18] sm:$0xff]
    %v490 = vld [vmem:[%s9] sm:$0x1]
    %v492 = vlaneseq
    %v493 = vshrl.u32 %v492, 7
    %v494 = vsub.s32 0, %v493
    %v495 = vrot.slane %v490, %v494
    %v498 = vsel %vm57, %v483, 0
    %500 = vmatprep.subr.mxu0 0.0
    %501 = vmatpush1.msra.mxu0 %v486
    %502 = vmatprep.subr.mxu0 0.0
    %503 = vmatpush1.msra.mxu0 %v487
    %504 = vmatprep.subr.mxu0 0.0
    %505 = vmatpush1.msra.mxu0 %v488
    %506 = vmatprep.subr.mxu0 0.0
    %507 = vmatpush1.msra.mxu0 %v489
    %508 = vmatprep.subr.mxu0 0.0
    %509 = vmatpush1.msra.mxu0 0.0
    %510 = vmatprep.subr.mxu0 0.0
    %511 = vmatpush1.msra.mxu0 0.0
    %512 = vmatprep.subr.mxu0 0.0
    %513 = vmatpush1.msra.mxu0 0.0
    %514 = vmatprep.subr.mxu0 0.0
    %515 = vmatpush1.msra.mxu0 0.0
    %516 = vmatprep.subr.mxu0 0.0
    %517 = vmatpush1.msra.mxu0 0.0
    %518 = vmatprep.subr.mxu0 0.0
    %519 = vmatpush1.msra.mxu0 0.0
    %520 = vmatprep.subr.mxu0 0.0
    %521 = vmatpush1.msra.mxu0 0.0
    %522 = vmatprep.subr.mxu0 0.0
    %523 = vmatpush1.msra.mxu0 0.0
    %524 = vmatprep.subr.mxu0 0.0
    %525 = vmatpush1.msra.mxu0 0.0
    %526 = vmatprep.subr.mxu0 0.0
    %527 = vmatpush1.msra.mxu0 0.0
    %528 = vmatprep.subr.mxu0 0.0
    %529 = vmatpush1.msra.mxu0 0.0
    %530 = vmatprep.subr.mxu0 0.0
    %531 = vmatpush1.msra.mxu0 0.0
    %532 = vmatprep.subr.mxu0 0.0
    %533 = vmatpush1.msra.mxu0 0.0
    %534 = vmatprep.subr.mxu0 0.0
    %535 = vmatpush1.msra.mxu0 0.0
    %536 = vmatprep.subr.mxu0 0.0
    %537 = vmatpush1.msra.mxu0 0.0
    %538 = vmatprep.subr.mxu0 0.0
    %539 = vmatpush1.msra.mxu0 0.0
    %540 = vmatprep.subr.mxu0 0.0
    %541 = vmatpush1.msra.mxu0 0.0
    %542 = vmatprep.subr.mxu0 0.0
    %543 = vmatpush1.msra.mxu0 0.0
    %544 = vmatprep.subr.mxu0 0.0
    %545 = vmatpush1.msra.mxu0 0.0
    %546 = vmatprep.subr.mxu0 0.0
    %547 = vmatpush1.msra.mxu0 0.0
    %548 = vmatprep.subr.mxu0 0.0
    %549 = vmatpush1.msra.mxu0 0.0
    %550 = vmatprep.subr.mxu0 0.0
    %551 = vmatpush1.msra.mxu0 0.0
    %552 = vmatprep.subr.mxu0 0.0
    %553 = vmatpush1.msra.mxu0 0.0
    %554 = vmatprep.subr.mxu0 0.0
    %555 = vmatpush1.msra.mxu0 0.0
    %556 = vmatprep.subr.mxu0 0.0
    %557 = vmatpush1.msra.mxu0 0.0
    %558 = vmatprep.subr.mxu0 0.0
    %559 = vmatpush1.msra.mxu0 0.0
    %560 = vmatprep.subr.mxu0 0.0
    %561 = vmatpush1.msra.mxu0 0.0
    %562 = vmatprep.subr.mxu0 0.0
    %563 = vmatpush1.msra.mxu0 0.0
    %564 = vmatprep.mubr.f32.mxu0 0.0
    %565 = vmatmul.mubr.f32.gmra.mrb[0].mxu0 %v498
    %v566 = vpop.f32.mrb[0].mxu0
    %v567 = vadd.f32 %v495, %v566
    %v568 = vpop.f32.mrb[0].mxu0
    %569 = vdwg.mxu0
    %v570 = vmax.f32 %v567, 0.0
    %v571 = vld [vmem:[%s10] sm:$0xff]
    %v572 = vld [vmem:[%s10 + $0x8] sm:$0xff]
    %v573 = vld [vmem:[%s10 + $0x10] sm:$0xff]
    %v574 = vld [vmem:[%s10 + $0x18] sm:$0xff]
    %v575 = vld [vmem:[%s10 + $0x20] sm:$0xff]
    %v576 = vld [vmem:[%s10 + $0x28] sm:$0xff]
    %v577 = vld [vmem:[%s10 + $0x30] sm:$0xff]
    %v578 = vld [vmem:[%s10 + $0x38] sm:$0xff]
    %v579 = vld [vmem:[%s11] sm:$0x1]
    %v581 = vlaneseq
    %v582 = vshrl.u32 %v581, 7
    %v583 = vsub.s32 0, %v582
    %v584 = vrot.slane %v579, %v583
    %v587 = vsel %vm174, %v570, 0
    %589 = vmatprep.subr.mxu0 0.0
    %590 = vmatpush1.msra.mxu0 %v571
    %591 = vmatprep.subr.mxu0 0.0
    %592 = vmatpush1.msra.mxu0 %v572
    %593 = vmatprep.subr.mxu0 0.0
    %594 = vmatpush1.msra.mxu0 %v573
    %595 = vmatprep.subr.mxu0 0.0
    %596 = vmatpush1.msra.mxu0 %v574
    %597 = vmatprep.subr.mxu0 0.0
    %598 = vmatpush1.msra.mxu0 %v575
    %599 = vmatprep.subr.mxu0 0.0
    %600 = vmatpush1.msra.mxu0 %v576
    %601 = vmatprep.subr.mxu0 0.0
    %602 = vmatpush1.msra.mxu0 %v577
    %603 = vmatprep.subr.mxu0 0.0
    %604 = vmatpush1.msra.mxu0 %v578
    %605 = vmatprep.subr.mxu0 0.0
    %606 = vmatpush1.msra.mxu0 0.0
    %607 = vmatprep.subr.mxu0 0.0
    %608 = vmatpush1.msra.mxu0 0.0
    %609 = vmatprep.subr.mxu0 0.0
    %610 = vmatpush1.msra.mxu0 0.0
    %611 = vmatprep.subr.mxu0 0.0
    %612 = vmatpush1.msra.mxu0 0.0
    %613 = vmatprep.subr.mxu0 0.0
    %614 = vmatpush1.msra.mxu0 0.0
    %615 = vmatprep.subr.mxu0 0.0
    %616 = vmatpush1.msra.mxu0 0.0
    %617 = vmatprep.subr.mxu0 0.0
    %618 = vmatpush1.msra.mxu0 0.0
    %619 = vmatprep.subr.mxu0 0.0
    %620 = vmatpush1.msra.mxu0 0.0
    %621 = vmatprep.subr.mxu0 0.0
    %622 = vmatpush1.msra.mxu0 0.0
    %623 = vmatprep.subr.mxu0 0.0
    %624 = vmatpush1.msra.mxu0 0.0
    %625 = vmatprep.subr.mxu0 0.0
    %626 = vmatpush1.msra.mxu0 0.0
    %627 = vmatprep.subr.mxu0 0.0
    %628 = vmatpush1.msra.mxu0 0.0
    %629 = vmatprep.subr.mxu0 0.0
    %630 = vmatpush1.msra.mxu0 0.0
    %631 = vmatprep.subr.mxu0 0.0
    %632 = vmatpush1.msra.mxu0 0.0
    %633 = vmatprep.subr.mxu0 0.0
    %634 = vmatpush1.msra.mxu0 0.0
    %635 = vmatprep.subr.mxu0 0.0
    %636 = vmatpush1.msra.mxu0 0.0
    %637 = vmatprep.subr.mxu0 0.0
    %638 = vmatpush1.msra.mxu0 0.0
    %639 = vmatprep.subr.mxu0 0.0
    %640 = vmatpush1.msra.mxu0 0.0
    %641 = vmatprep.subr.mxu0 0.0
    %642 = vmatpush1.msra.mxu0 0.0
    %643 = vmatprep.subr.mxu0 0.0
    %644 = vmatpush1.msra.mxu0 0.0
    %645 = vmatprep.subr.mxu0 0.0
    %646 = vmatpush1.msra.mxu0 0.0
    %647 = vmatprep.subr.mxu0 0.0
    %648 = vmatpush1.msra.mxu0 0.0
    %649 = vmatprep.subr.mxu0 0.0
    %650 = vmatpush1.msra.mxu0 0.0
    %651 = vmatprep.subr.mxu0 0.0
    %652 = vmatpush1.msra.mxu0 0.0
    %653 = vmatprep.mubr.f32.mxu0 0.0
    %654 = vmatmul.mubr.f32.gmra.mrb[0].mxu0 %v587
    %v655 = vpop.f32.mrb[0].mxu0
    %v656 = vadd.f32 %v584, %v655
    %v657 = vpop.f32.mrb[0].mxu0
    %658 = vdwg.mxu0
    %vm659 = vcmask 254976
    %660 = vst.msk [vmem:[#allocation2] sm:$0x3] %vm659, %v656
    // Predicated region
    $region50: #{tpu_custom_call.1} parent=1 // pred_check
      _
    $region51: #{tpu_custom_call.1} parent=1 // pred_check_branch
      %662 = sbr.rel (0) target = $region53
    $region52: #{tpu_custom_call.1} parent=1 // pred_region
      %s664 = ssub.s32 32, 32
      %665 = vsyncadd [#allocation3], %s664
      %s667 = sshll.u32 [#allocation2], 4
      %s668 = int_to_ptr.vmem [resolvable:$true] %s667
      %670 = dma.vmem_to_hbm [thread:$0]  %s668, 32, %s12, [#allocation3]
    $region53: #{tpu_custom_call.1} parent=1 // pred_fallthru
      _
    // Predicated region
    $region54: #{tpu_custom_call.1} parent=1 // pred_check
      _
    $region55: #{tpu_custom_call.1} parent=1 // pred_check_branch
      %672 = sbr.rel (0) target = $region57
    $region56: #{tpu_custom_call.1} parent=1 // pred_region
      %673 = dma.done [#allocation3], 32
    $region57: #{tpu_custom_call.1} parent=1 // pred_fallthru
      _
    %674 = vsyncpa [#allocation3], 1

</llo_original>
